<compile_context>
chip_gen: v5e
topology: v5e:2x2
jax: 0.10.0
libtpu: 0.0.40
codegen_flags: <defaults>
</compile_context>

<pallas_src>
import functools
import math

import jax
import jax.numpy as jnp
from jax import lax
from jax.experimental import pallas as pl
from jax.experimental.pallas import tpu as pltpu


LAYER_CFG = ((3, 64, 1), (4, 128, 2), (6, 256, 2), (3, 512, 2))   # ResNet-50


def _round_up(x, m):
    return ((x + m - 1) // m) * m


# ----------------------------------------------------------------------------
# Pallas kernels
# ----------------------------------------------------------------------------
def _gemm_epilogue_kernel(*refs, n_terms, relu, has_residual):
    """out = act( sum_t A_t @ W_t + shift (+ residual) ), single K pass.

    refs = a0, w0, a1, w1, ..., shift, [residual], out
    """
    o_ref = refs[-1]
    acc = jnp.dot(refs[0][...], refs[1][...], preferred_element_type=jnp.float32)
    for t in range(1, n_terms):
        acc = acc + jnp.dot(refs[2 * t][...], refs[2 * t + 1][...],
                            preferred_element_type=jnp.float32)
    acc = acc + refs[2 * n_terms][...]                      # folded-BN shift
    if has_residual:
        acc = acc + refs[2 * n_terms + 1][...].astype(jnp.float32)
    if relu:
        acc = jnp.maximum(acc, 0.0)
    o_ref[...] = acc.astype(o_ref.dtype)


def _head_kernel(p_ref, w1_ref, b1_ref, w2_ref, b2_ref, o_ref, acc_ref):
    """Fused Linear -> (Dropout=identity) -> ReLU -> Linear, gridded over K."""
    k = pl.program_id(0)

    @pl.when(k == 0)
    def _():
        acc_ref[...] = jnp.zeros_like(acc_ref)

    acc_ref[...] += jnp.dot(p_ref[...], w1_ref[...],
                            preferred_element_type=jnp.float32)

    @pl.when(k == pl.num_programs(0) - 1)
    def _():
        h = jnp.maximum(acc_ref[...] + b1_ref[...], 0.0)      # Linear1 + ReLU
        # TODO(synk): Dropout(p=0.2) is inference-mode identity here.
        o_ref[...] = (jnp.dot(h.astype(w2_ref.dtype), w2_ref[...],
                              preferred_element_type=jnp.float32)
                      + b2_ref[...]).astype(o_ref.dtype)      # Linear2


# ----------------------------------------------------------------------------
# Tiling / GEMM wrapper (im2col & reshapes are glue; compute is in the kernel)
# ----------------------------------------------------------------------------
def _select_tiles(M, N):
    """Large tiles, lane-dense N, and >= 2 parallel grid steps (v7x 2 TCs)."""
    tm = min(512, _round_up(M, 8))
    Mp = _round_up(M, tm)
    Np = _round_up(N, 128)
    tn = 256 if Np % 256 == 0 else 128
    if (Mp // tm) * (Np // tn) < 2:          # give the 2nd TensorCore work
        if Np // 128 >= 2:
            tn = 128
        elif Mp // 8 >= 2:
            tm = _round_up(Mp // 2, 8)
            Mp = _round_up(M, tm)
    return tm, Mp, tn, Np


def _fused_matmul_epilogue(terms, shift, *, relu, residual=None,
                           out_dtype=jnp.bfloat16):
    """act( sum_t A_t @ W_t + shift (+ residual) ).

    terms: list of (A (M, K_t), W (K_t, N)).  Single collapsed-K MXU pass per
    term; grid is (M tiles, N tiles), both "parallel".
    """
    M = terms[0][0].shape[0]
    N = terms[0][1].shape[1]
    tm, Mp, tn, Np = _select_tiles(M, N)

    args, in_specs = [], []
    for (A, Wm) in terms:
        K = A.shape[1]
        Kp = _round_up(K, 256) if K > 128 else _round_up(K, 128)
        Ap = jnp.pad(A.astype(jnp.bfloat16), ((0, Mp - M), (0, Kp - K)))
        Wp = jnp.pad(Wm.astype(jnp.bfloat16), ((0, Kp - K), (0, Np - N)))
        args += [Ap, Wp]
        in_specs += [pl.BlockSpec((tm, Kp), lambda i, j: (i, 0)),
                     pl.BlockSpec((Kp, tn), lambda i, j: (0, j))]

    shift_p = jnp.pad(shift.astype(jnp.float32), (0, Np - N)).reshape(1, Np)
    args.append(shift_p)
    in_specs.append(pl.BlockSpec((1, tn), lambda i, j: (0, j)))

    has_residual = residual is not None
    if has_residual:
        res = jnp.pad(residual.reshape(M, N).astype(jnp.bfloat16),
                      ((0, Mp - M), (0, Np - N)))
        args.append(res)
        in_specs.append(pl.BlockSpec((tm, tn), lambda i, j: (i, j)))

    kernel = functools.partial(_gemm_epilogue_kernel, n_terms=len(terms),
                               relu=relu, has_residual=has_residual)
    out = pl.pallas_call(
        kernel,
        out_shape=jax.ShapeDtypeStruct((Mp, Np), out_dtype),
        grid_spec=pltpu.PrefetchScalarGridSpec(
            num_scalar_prefetch=0,
            grid=(Mp // tm, Np // tn),
            in_specs=in_specs,
            out_specs=pl.BlockSpec((tm, tn), lambda i, j: (i, j))),
        compiler_params=pltpu.CompilerParams(
            dimension_semantics=("parallel", "parallel"),
            vmem_limit_bytes=32 << 20),
    )(*args)
    return out[:M, :N]


def _im2col(x, kh, kw, stride, pad):
    """NHWC activation -> (M, K) matrix with K ordered (C, kh, kw)."""
    B, H, W, C = x.shape
    if kh == 1 and kw == 1 and pad == 0:           # 1x1 conv: no patches at all
        xs = x[:, ::stride, ::stride, :]
        Ho, Wo = xs.shape[1], xs.shape[2]
        return xs.reshape(B * Ho * Wo, C), Ho, Wo
    patches = lax.conv_general_dilated_patches(
        x, (kh, kw), (stride, stride), ((pad, pad), (pad, pad)),
        dimension_numbers=('NHWC', 'HWIO', 'NHWC'))
    Ho, Wo, K = patches.shape[1], patches.shape[2], patches.shape[3]
    return patches.reshape(B * Ho * Wo, K), Ho, Wo


def conv_bn(x, w, shift, *, stride, pad, relu, residual=None):
    """conv2d (BN scale folded into w) + shift (+ residual) (+ ReLU). NHWC."""
    B = x.shape[0]
    O = w.shape[0]
    A, Ho, Wo = _im2col(x, w.shape[2], w.shape[3], stride, pad)
    Wm = w.reshape(O, -1).T                        # (K, O), channel-major order
    res = None if residual is None else residual.reshape(-1, O)
    out = _fused_matmul_epilogue([(A, Wm)], shift, relu=relu, residual=res)
    return out.reshape(B, Ho, Wo, O)


def conv_bn_plus_downsample(conv2_out, w3, s3, x_in, wd, sd, *, stride):
    """Fused conv3(1x1)+BN  +  downsample(1x1, stride)+BN  + add + ReLU."""
    B, Ho, Wo, width = conv2_out.shape
    O = w3.shape[0]
    A3 = conv2_out.reshape(B * Ho * Wo, width)
    xs = x_in[:, ::stride, ::stride, :]            # same spatial grid as conv2
    Ad = xs.reshape(B * Ho * Wo, xs.shape[3])
    W3 = w3.reshape(O, width).T
    Wd = wd.reshape(O, xs.shape[3]).T
    out = _fused_matmul_epilogue([(A3, W3), (Ad, Wd)], s3 + sd, relu=True)
    return out.reshape(B, Ho, Wo, O)


def maxpool_3x3_s2(x):
    """3x3 / stride-2 / pad-1 max-pool, NHWC.

    Per perf review: the previous Pallas version required a 9x stacked HBM
    copy of the feature map; a fusible jnp.maximum tree over 9 strided views
    of the padded map avoids that traffic entirely, so it stays in XLA.
    """
    B, H, W, C = x.shape
    Ho = (H + 2 - 3) // 2 + 1
    Wo = (W + 2 - 3) // 2 + 1
    xp = jnp.pad(x, ((0, 0), (1, 1), (1, 1), (0, 0)),
                 constant_values=float('-inf'))
    m = None
    for i in range(3):
        for j in range(3):
            v = xp[:, i:i + 2 * Ho - 1:2, j:j + 2 * Wo - 1:2, :]
            m = v if m is None else jnp.maximum(m, v)
    return m


def head_forward(pooled, w1, b1, w2, b2, *, tk=1024):
    """pooled (B, 2*in_features) f32 -> Linear -> ReLU -> Linear."""
    B, C = pooled.shape
    hidden = w1.shape[1]
    n_out = w2.shape[1]
    n_out_p = _round_up(n_out, 128)
    Bp = _round_up(B, 8)                       # full sublanes, unmasked store
    assert C % tk == 0

    pb = jnp.pad(pooled, ((0, Bp - B), (0, 0))).astype(jnp.bfloat16)
    w1b = w1.astype(jnp.bfloat16)
    w2b = jnp.pad(w2, ((0, 0), (0, n_out_p - n_out))).astype(jnp.bfloat16)
    b2p = jnp.pad(b2, (0, n_out_p - n_out)).reshape(1, n_out_p)

    out = pl.pallas_call(
        _head_kernel,
        out_shape=jax.ShapeDtypeStruct((Bp, n_out_p), jnp.float32),
        grid_spec=pltpu.PrefetchScalarGridSpec(
            num_scalar_prefetch=0,
            grid=(C // tk,),
            in_specs=[
                pl.BlockSpec((Bp, tk), lambda k: (0, k)),
                pl.BlockSpec((tk, hidden), lambda k: (k, 0)),
                pl.BlockSpec((1, hidden), lambda k: (0, 0)),
                pl.BlockSpec((hidden, n_out_p), lambda k: (0, 0)),
                pl.BlockSpec((1, n_out_p), lambda k: (0, 0)),
            ],
            out_specs=pl.BlockSpec((Bp, n_out_p), lambda k: (0, 0)),
            scratch_shapes=[pltpu.VMEM((Bp, hidden), jnp.float32)]),
        compiler_params=pltpu.CompilerParams(
            dimension_semantics=("arbitrary",), vmem_limit_bytes=32 << 20),
    )(pb, w1b, b1.reshape(1, hidden), w2b, b2p)
    return out[:B, :n_out]


# ----------------------------------------------------------------------------
# Deterministic synthetic parameters (BN scale folded into conv weights)
# ----------------------------------------------------------------------------
def _conv_bn_fold(key, out_c, in_c, k, eps=1e-5):
    kw_, kg_ = jax.random.split(key)
    std = math.sqrt(2.0 / (in_c * k * k))
    w = jax.random.normal(kw_, (out_c, in_c, k, k), jnp.float32) * std
    gamma = 1.0 + 0.02 * jax.random.normal(kg_, (out_c,), jnp.float32)
    beta = jnp.zeros((out_c,), jnp.float32)
    mean = jnp.zeros((out_c,), jnp.float32)      # running stats (eval mode)
    var = jnp.ones((out_c,), jnp.float32)
    scale = gamma / jnp.sqrt(var + eps)
    shift = beta - mean * scale
    return w * scale[:, None, None, None], shift


def make_backbone_params(key):
    keys = iter(jax.random.split(key, 256))
    stem_w, stem_shift = _conv_bn_fold(next(keys), 64, 3, 7)
    params = {'stem_w': stem_w, 'stem_shift': stem_shift, 'layers': []}
    in_c = 64
    for n_blocks, width, stride in LAYER_CFG:
        out_c = width * 4
        blocks = []
        for b in range(n_blocks):
            s = stride if b == 0 else 1
            w1, s1 = _conv_bn_fold(next(keys), width, in_c, 1)
            w2, s2 = _conv_bn_fold(next(keys), width, width, 3)
            w3, s3 = _conv_bn_fold(next(keys), out_c, width, 1)
            blk = {'w1': w1, 's1': s1, 'w2': w2, 's2': s2, 'w3': w3, 's3': s3}
            if s != 1 or in_c != out_c:
                wd, sd = _conv_bn_fold(next(keys), out_c, in_c, 1)
                blk['wd'] = wd
                blk['sd'] = sd
            blocks.append(blk)
            in_c = out_c
        params['layers'].append(blocks)
    return params


def make_head_params(key, in_features=2048, num_classes=5):
    k1, k2 = jax.random.split(key)
    hidden = in_features // 2
    w1 = jax.random.normal(k1, (2 * in_features, hidden), jnp.float32) \
        * math.sqrt(2.0 / (2 * in_features))
    b1 = jnp.zeros((hidden,), jnp.float32)
    w2 = jax.random.normal(k2, (hidden, num_classes), jnp.float32) \
        * math.sqrt(2.0 / hidden)
    b2 = jnp.zeros((num_classes,), jnp.float32)
    return w1, b1, w2, b2


# ----------------------------------------------------------------------------
# Forward pass (mirrors Network_wo_fc.forward), NHWC internally
# ----------------------------------------------------------------------------
def backbone_forward(x, p):
    x = conv_bn(x, p['stem_w'], p['stem_shift'], stride=2, pad=3, relu=True)
    x = maxpool_3x3_s2(x)
    for li, (n_blocks, _width, stride) in enumerate(LAYER_CFG):
        for b in range(n_blocks):
            s = stride if b == 0 else 1            # static (architecture) stride
            blk = p['layers'][li][b]
            out = conv_bn(x, blk['w1'], blk['s1'], stride=1, pad=0, relu=True)
            out = conv_bn(out, blk['w2'], blk['s2'], stride=s, pad=1, relu=True)
            if 'wd' in blk:
                # conv3 + downsample conv fused into one Pallas call
                x = conv_bn_plus_downsample(out, blk['w3'], blk['s3'],
                                            x, blk['wd'], blk['sd'], stride=s)
            else:
                x = conv_bn(out, blk['w3'], blk['s3'], stride=1, pad=0,
                            relu=True, residual=x)
    return x


@jax.jit
def network_wo_fc_forward(x, mask, backbone_params, head_params):
    # x, mask: NCHW f32 (PyTorch layout). Batch-concat -> single backbone pass.
    B = x.shape[0]
    xb = jnp.concatenate([x, mask], axis=0)                 # (2B, 3, H, W)
    xb = xb.transpose(0, 2, 3, 1).astype(jnp.bfloat16)      # NHWC, bf16
    feats = backbone_forward(xb, backbone_params)           # (2B, Hf, Wf, 2048)
    img_f, mask_f = feats[:B], feats[B:]
    features = jnp.concatenate([img_f, mask_f], axis=-1)    # (B, Hf, Wf, 4096)
    # adaptive_avg_pool2d(1,1): tiny reduction, done in plain JAX glue (f32).
    pooled = jnp.mean(features.astype(jnp.float32), axis=(1, 2))  # (B, 4096)
    return head_forward(pooled, *head_params)


# ----------------------------------------------------------------------------
# Reference conv (for the in-script patch-ordering unit test)
# ----------------------------------------------------------------------------
def _conv_reference(x, w, shift, *, stride, pad, relu):
    y = lax.conv_general_dilated(
        x, jnp.transpose(w, (2, 3, 1, 0)),       # (O,C,kh,kw) -> HWIO
        (stride, stride), ((pad, pad), (pad, pad)),
        dimension_numbers=('NHWC', 'HWIO', 'NHWC'))
    y = y + shift
    if relu:
        y = jnp.maximum(y, 0.0)
    return y


if __name__ == "__main__":
    key = jax.random.PRNGKey(0)
    kx, km, kb, kh, kt = jax.random.split(key, 5)

    # --- unit test: Pallas conv-as-matmul vs lax.conv_general_dilated --------
    kt1, kt2, kt3 = jax.random.split(kt, 3)
    xt = jax.random.normal(kt1, (2, 10, 10, 8), jnp.float32)
    wt = jax.random.normal(kt2, (16, 8, 3, 3), jnp.float32) * 0.2
    st = jax.random.normal(kt3, (16,), jnp.float32) * 0.1
    for s_ in (1, 2):
        got = conv_bn(xt.astype(jnp.bfloat16), wt, st, stride=s_, pad=1,
                      relu=True).astype(jnp.float32)
        ref = _conv_reference(xt, wt, st, stride=s_, pad=1, relu=True)
        rel = float(jnp.max(jnp.abs(got - ref)) /
                    (jnp.max(jnp.abs(ref)) + 1e-6))
        assert rel < 0.05, f"conv self-test failed (stride={s_}, rel={rel})"

    # --- full forward ---------------------------------------------------------
    B, H, W = 2, 64, 64
    x = jax.random.normal(kx, (B, 3, H, W), jnp.float32)
    mask = jax.random.normal(km, (B, 3, H, W), jnp.float32)

    backbone_params = make_backbone_params(kb)
    head_params = make_head_params(kh, in_features=2048, num_classes=5)

    out = network_wo_fc_forward(x, mask, backbone_params, head_params)
    out = jax.block_until_ready(out)
    assert out.shape == (B, 5) and out.dtype == jnp.float32
    print("KERNEL_OK")
</pallas_src>

<mosaic_0001>
module attributes {stable_mosaic.version = 11 : i64} {
  func.func @_gemm_epilogue_kernel(%arg0: i32, %arg1: i32, %arg2: memref<104x128xbf16, #tpu.memory_space<vmem>>, %arg3: memref<128x128xbf16, #tpu.memory_space<vmem>>, %arg4: memref<1x128xf32, #tpu.memory_space<vmem>>, %arg5: memref<104x128xbf16, #tpu.memory_space<vmem>>) attributes {dimension_semantics = [#tpu.dimension_semantics<parallel>, #tpu.dimension_semantics<parallel>], iteration_bounds = array<i64: 2, 1>, scalar_prefetch = 0 : i64, scratch_operands = 0 : i64, tpu.core_type = #tpu.core_type<tc>, window_params = [{transform_indices = @transform_0, window_bounds = array<i64: 104, 128>}, {transform_indices = @transform_1, window_bounds = array<i64: 128, 128>}, {transform_indices = @transform_2, window_bounds = array<i64: 1, 128>}, {transform_indices = @transform_3, window_bounds = array<i64: 104, 128>}]} {
    %c0 = arith.constant 0 : index
    %c0_0 = arith.constant 0 : index
    %0 = vector.load %arg2[%c0, %c0_0] : memref<104x128xbf16, #tpu.memory_space<vmem>>, vector<104x128xbf16>
    %c0_1 = arith.constant 0 : index
    %c0_2 = arith.constant 0 : index
    %1 = vector.load %arg3[%c0_1, %c0_2] : memref<128x128xbf16, #tpu.memory_space<vmem>>, vector<128x128xbf16>
    %cst = arith.constant dense<0.000000e+00> : vector<104x128xf32>
    %2 = tpu.matmul %0, %1, %cst {dimension_numbers = #tpu.dot_dimension_numbers<[1], [0], [0], [1], [0, 0, 1, 1], [], []>} : vector<104x128xbf16>, vector<128x128xbf16>, vector<104x128xf32> -> vector<104x128xf32>
    %c0_3 = arith.constant 0 : index
    %c0_4 = arith.constant 0 : index
    %3 = vector.load %arg4[%c0_3, %c0_4] : memref<1x128xf32, #tpu.memory_space<vmem>>, vector<1x128xf32>
    %4 = vector.broadcast %3 : vector<1x128xf32> to vector<104x128xf32>
    %5 = arith.addf %2, %4 : vector<104x128xf32>
    %cst_5 = arith.constant 0.000000e+00 : f32
    %6 = vector.broadcast %cst_5 : f32 to vector<104x128xf32>
    %7 = arith.maximumf %5, %6 : vector<104x128xf32>
    %8 = arith.truncf %7 : vector<104x128xf32> to vector<104x128xbf16>
    %c0_6 = arith.constant 0 : index
    %c0_7 = arith.constant 0 : index
    %9 = vector.load %arg5[%c0_6, %c0_7] : memref<104x128xbf16, #tpu.memory_space<vmem>>, vector<104x128xbf16>
    tpu.vector_store %arg5[%c0_6, %c0_7], %8 {strides = array<i32>} : memref<104x128xbf16, #tpu.memory_space<vmem>>, vector<104x128xbf16>,
    return
  }
  func.func @transform_0(%arg0: i32, %arg1: i32) -> (i32, i32) {
    %c0_i32 = arith.constant 0 : i32
    %c0_i32_0 = arith.constant 0 : i32
    return %arg0, %c0_i32 : i32, i32
  }
  func.func @transform_1(%arg0: i32, %arg1: i32) -> (i32, i32) {
    %c0_i32 = arith.constant 0 : i32
    %c0_i32_0 = arith.constant 0 : i32
    return %c0_i32, %arg1 : i32, i32
  }
  func.func @transform_2(%arg0: i32, %arg1: i32) -> (i32, i32) {
    %c0_i32 = arith.constant 0 : i32
    %c0_i32_0 = arith.constant 0 : i32
    return %c0_i32, %arg1 : i32, i32
  }
  func.func @transform_3(%arg0: i32, %arg1: i32) -> (i32, i32) {
    %c0_i32 = arith.constant 0 : i32
    return %arg0, %arg1 : i32, i32
  }
}

</mosaic_0001>

<llo_original>
// kernel: tpu_custom_call.1
$region0: #{tpu_custom_call.1}
  #allocation0 [shape = 'u32[]', space=smem, size = 0x4, offset = 0x4, fixed_abs, tag = 'smem constant byte address 0x4 - core index']
  #allocation1 [shape = 'u32[72,128]{1,0:T(1,128)}', space=vmem, size = 0x9000, scoped, tag = 'internal scratch']
  %s0 = inlined_call_operand.hbm [shape: bf16[208,128], index: 0, kind: input, shape index: {}]
  %s1 = inlined_call_operand.hbm [shape: bf16[128,128], index: 1, kind: input, shape index: {}]
  %s2 = inlined_call_operand.vmem [shape: f32[1,128], index: 2, kind: input, shape index: {}]
  %s3 = inlined_call_operand.hbm [shape: bf16[208,128], index: 3, kind: output, shape index: {}]
  %s4 = sld [smem:[#allocation0]]
  $region53: #{tpu_custom_call.1} parent=0
    _
  %s6 = ssub.s32 1, %s4
  %s7 = scalar_select 0, %s6, %s4
  $region1: #{tpu_custom_call.1} parent=0
    #allocation2 [shape = 'u8[53248]{0}', space=vmem, size = 0xd000, scoped, tag = 'input window, operand 0']
    #allocation3 [shape = 's32[2]{0}', space=sflag, size = 0x8, scoped, tag = 'scoped memory for tpu_custom_call.1']
    #allocation4 [shape = 's32[2]{0}', space=sflag, size = 0x8, scoped, tag = 'scoped memory for tpu_custom_call.1']
    #allocation5 [shape = 'u8[32768]{0}', space=vmem, size = 0x8000, scoped, tag = 'input window, operand 1, single buffered']
    #allocation6 [shape = 's32[1]{0}', space=sflag, size = 0x4, scoped, tag = 'scoped memory for tpu_custom_call.1']
    #allocation7 [shape = 'u8[53248]{0}', space=vmem, size = 0xd000, scoped, tag = 'output window, operand 0']
    %8 = vsyncpa [#allocation3], 0
    %s9 = scalar_lea.sflag [#allocation3], 1
    %10 = vsyncpa %s9, 0
    %11 = vsyncpa [#allocation6], 0
    %12 = vsyncpa [#allocation4], 0
    %s13 = scalar_lea.sflag [#allocation4], 1
    %14 = vsyncpa %s13, 0
    loop: start=0, step=1, limit=4
    $region2: #{tpu_custom_call.1} parent=1 // loop_pre_header
      _
    $region3: #{tpu_custom_call.1} parent=1 // loop_header
      %s16 = sphi 0, %s20
      %p17 = scmp.ge.s32.totalorder %s16, 4
      %s23 = sphi 0, %s35
      %s24 = sphi 0, %s31
      %s25 = sphi 0, %s23
      %s26 = sphi 0, %s24
      %s27 = sphi 0, %s25
      %s28 = sphi 0, %s26
      %s38 = sphi 0, %s40
      %s41 = sphi 0, %s38
      %s42 = sphi 0, %s41
      %s58 = sphi 0, %s42
      %s64 = sphi 0, %s66
      %s67 = sphi 0, %s64
      %s68 = sphi 0, %s67
      %s84 = sphi 0, %s68
      %s90 = sphi 0, %s92
      %s93 = sphi 0, %s90
      %s94 = sphi 0, %s93
      %s110 = sphi 0, %s94
      %s118 = sphi 0, %s120
      %s121 = sphi 0, %s118
      %s122 = sphi 0, %s121
      %s138 = sphi 0, %s122
    $region4: #{tpu_custom_call.1} parent=1 // loop_header_branch
      %19 = sbr.rel (%p17) target = $region8
    $region5: #{tpu_custom_call.1} parent=1 // loop_body
      %s21 = ssub.s32 %s16, 1
      %s22 = ssub.s32 %s16, 2
      %s29 = sadd.s32 1, %s24
      %p30 = scmp.ge.s32.totalorder %s29, 1
      %s31 = scalar_select %p30, 0, %s29
      %s32 = sadd.s32 1, %s23
      %s33 = scalar_select %p30, %s32, %s23
      %p34 = scmp.ge.s32.totalorder %s33, 2
      %s35 = scalar_select %p34, 0, %s33
      %s36 = ssub.s32 %s23, %s35
      %p37 = scmp.eq.s32.totalorder %s36, 0
      %s39 = sadd.s32 %s38, 1
      %s40 = scalar_select %p37, %s38, %s39
      %p43 = pneg %p37
      %p44 = scmp.eq.s32.totalorder %s16, 1
      %p45 = por %p43, %p44
      %p46 = scmp.ne.s32.totalorder %s38, %s41
      %p47 = scmp.eq.s32.totalorder %s16, 0
      %p48 = por %p46, %p47
      %p49 = scmp.ne.s32.totalorder %s38, %s41
      %p50 = scmp.eq.s32.totalorder %s21, 1
      %p51 = por %p49, %p50
      %p52 = scmp.ne.s32.totalorder %s41, %s42
      %p53 = scmp.eq.s32.totalorder %s21, 0
      %p54 = por %p52, %p53
      %p55 = scmp.ne.s32.totalorder %s41, %s42
      %p56 = scmp.eq.s32.totalorder %s22, 1
      %p57 = por %p55, %p56
      %p59 = scmp.ne.s32.totalorder %s42, %s58
      %p60 = scmp.eq.s32.totalorder %s22, 0
      %p61 = por %p59, %p60
      %s62 = ssub.s32 %s24, %s31
      %p63 = scmp.eq.s32.totalorder %s62, 0
      %s65 = sadd.s32 %s64, 1
      %s66 = scalar_select %p63, %s64, %s65
      %p69 = pneg %p63
      %p70 = scmp.eq.s32.totalorder %s16, 1
      %p71 = por %p69, %p70
      %p72 = scmp.ne.s32.totalorder %s64, %s67
      %p73 = scmp.eq.s32.totalorder %s16, 0
      %p74 = por %p72, %p73
      %p75 = scmp.ne.s32.totalorder %s64, %s67
      %p76 = scmp.eq.s32.totalorder %s21, 1
      %p77 = por %p75, %p76
      %p78 = scmp.ne.s32.totalorder %s67, %s68
      %p79 = scmp.eq.s32.totalorder %s21, 0
      %p80 = por %p78, %p79
      %p81 = scmp.ne.s32.totalorder %s67, %s68
      %p82 = scmp.eq.s32.totalorder %s22, 1
      %p83 = por %p81, %p82
      %p85 = scmp.ne.s32.totalorder %s68, %s84
      %p86 = scmp.eq.s32.totalorder %s22, 0
      %p87 = por %p85, %p86
      %s88 = ssub.s32 %s24, %s31
      %p89 = scmp.eq.s32.totalorder %s88, 0
      %s91 = sadd.s32 %s90, 1
      %s92 = scalar_select %p89, %s90, %s91
      %p95 = pneg %p89
      %p96 = scmp.eq.s32.totalorder %s16, 1
      %p97 = por %p95, %p96
      %p98 = scmp.ne.s32.totalorder %s90, %s93
      %p99 = scmp.eq.s32.totalorder %s16, 0
      %p100 = por %p98, %p99
      %p101 = scmp.ne.s32.totalorder %s90, %s93
      %p102 = scmp.eq.s32.totalorder %s21, 1
      %p103 = por %p101, %p102
      %p104 = scmp.ne.s32.totalorder %s93, %s94
      %p105 = scmp.eq.s32.totalorder %s21, 0
      %p106 = por %p104, %p105
      %p107 = scmp.ne.s32.totalorder %s93, %s94
      %p108 = scmp.eq.s32.totalorder %s22, 1
      %p109 = por %p107, %p108
      %p111 = scmp.ne.s32.totalorder %s94, %s110
      %p112 = scmp.eq.s32.totalorder %s22, 0
      %p113 = por %p111, %p112
      %s114 = ssub.s32 %s23, %s35
      %s115 = ssub.s32 %s24, %s31
      %s116 = sor.u32 %s114, %s115
      %p117 = scmp.eq.s32.totalorder %s116, 0
      %s119 = sadd.s32 %s118, 1
      %s120 = scalar_select %p117, %s118, %s119
      %p123 = pneg %p117
      %p124 = scmp.eq.s32.totalorder %s16, 1
      %p125 = por %p123, %p124
      %p126 = scmp.ne.s32.totalorder %s118, %s121
      %p127 = scmp.eq.s32.totalorder %s16, 0
      %p128 = por %p126, %p127
      %p129 = scmp.ne.s32.totalorder %s118, %s121
      %p130 = scmp.eq.s32.totalorder %s21, 1
      %p131 = por %p129, %p130
      %p132 = scmp.ne.s32.totalorder %s121, %s122
      %p133 = scmp.eq.s32.totalorder %s21, 0
      %p134 = por %p132, %p133
      %p135 = scmp.ne.s32.totalorder %s121, %s122
      %p136 = scmp.eq.s32.totalorder %s22, 1
      %p137 = por %p135, %p136
      %p139 = scmp.ne.s32.totalorder %s122, %s138
      %p140 = scmp.eq.s32.totalorder %s22, 0
      %p141 = por %p139, %p140
      %p142 = scmp.le.s32.totalorder 1, %s16
      %p143 = scmp.lt.s32.totalorder %s16, 3
      %p144 = pnand %p142, %p143
      %p145 = pneg %p144
      // Predicated region
      $region9: #{tpu_custom_call.1} parent=5 // pred_check
        _
      $region10: #{tpu_custom_call.1} parent=5 // pred_check_branch
        %147 = sbr.rel (%p144) target = $region12
      $region11: #{tpu_custom_call.1} parent=5 // pred_region
        %s148 = ssub.s32 %s16, 1
        // Predicated region
        $region13: #{tpu_custom_call.1} parent=11 // pred_check
          %p149 = pneg %p80
        $region14: #{tpu_custom_call.1} parent=11 // pred_check_branch
          %151 = sbr.rel (%p149) target = $region16
        $region15: #{tpu_custom_call.1} parent=11 // pred_region
          %153 = vsyncadd [#allocation6], 0
          %s154 = smul.addr %s26, 4
          %s155 = scalar_lea.hbm %s1, %s154
          %s156 = sshll.u32 %s155, 4
          %s157 = int_to_ptr.hbm [resolvable:$true] %s156
          %s158 = sshll.u32 [#allocation5], 4
          %s159 = int_to_ptr.vmem [resolvable:$true] %s158
          %164 = dma.hbm_to_vmem [thread:$0]  %s157, 1024, %s159, [#allocation6], 64, 64, 4
        $region16: #{tpu_custom_call.1} parent=11 // pred_fallthru
          _
        // Predicated region
        $region17: #{tpu_custom_call.1} parent=11 // pred_check
          %p165 = pneg %p106
        $region18: #{tpu_custom_call.1} parent=11 // pred_check_branch
          %167 = sbr.rel (%p165) target = $region20
        $region19: #{tpu_custom_call.1} parent=11 // pred_region
          %p168 = scmp.lt.s32.totalorder %s26, 0
          %s169 = scalar_select %p168, %s26, 0
          %s170 = scalar_lea.vmem %s2, %s169
        $region20: #{tpu_custom_call.1} parent=11 // pred_fallthru
          _
      $region12: #{tpu_custom_call.1} parent=5 // pred_fallthru
        _
      %p171 = scmp.lt.s32.totalorder %s16, 2
      // Predicated region
      $region21: #{tpu_custom_call.1} parent=5 // pred_check
        %p172 = pneg %p171
      $region22: #{tpu_custom_call.1} parent=5 // pred_check_branch
        %174 = sbr.rel (%p172) target = $region24
      $region23: #{tpu_custom_call.1} parent=5 // pred_region
        // Predicated region
        $region25: #{tpu_custom_call.1} parent=23 // pred_check
          %p175 = pneg %p48
        $region26: #{tpu_custom_call.1} parent=23 // pred_check_branch
          %177 = sbr.rel (%p175) target = $region28
        $region27: #{tpu_custom_call.1} parent=23 // pred_region
          %s178 = sand.u32 %s38, 1
          %s179 = scalar_lea.sflag [#allocation3], %s178
          %s180 = sand.u32 %s38, 1
          %s181 = smul.addr %s180, 52
          %s182 = scalar_lea.vmem [#allocation2], %s181
          %s183 = smul.u32 13, %s23
          %185 = vsyncadd %s179, 0
          %s186 = smul.addr %s183, 4
          %s187 = scalar_lea.hbm %s0, %s186
          %s188 = sshll.u32 %s187, 4
          %s189 = int_to_ptr.hbm [resolvable:$true] %s188
          %s190 = sshll.u32 %s182, 4
          %s191 = int_to_ptr.vmem [resolvable:$true] %s190
          %196 = dma.hbm_to_vmem [thread:$0]  %s189, 832, %s191, %s179, 64, 64, 4
        $region28: #{tpu_custom_call.1} parent=23 // pred_fallthru
          _
      $region24: #{tpu_custom_call.1} parent=5 // pred_fallthru
        _
      %p197 = scmp.le.s32.totalorder 1, %s16
      %p198 = scmp.lt.s32.totalorder %s16, 3
      %p199 = pnand %p197, %p198
      %p200 = pneg %p199
      // Predicated region
      $region29: #{tpu_custom_call.1} parent=5 // pred_check
        _
      $region30: #{tpu_custom_call.1} parent=5 // pred_check_branch
        %202 = sbr.rel (%p199) target = $region32
      $region31: #{tpu_custom_call.1} parent=5 // pred_region
        %s203 = ssub.s32 %s16, 1
        %s204 = sand.u32 %s41, 1
        %s205 = scalar_lea.sflag [#allocation3], %s204
        %s206 = sand.u32 %s41, 1
        %s207 = smul.addr %s206, 52
        %s208 = scalar_lea.vmem [#allocation2], %s207
        // Predicated region
        $region33: #{tpu_custom_call.1} parent=31 // pred_check
          %p209 = pneg %p54
        $region34: #{tpu_custom_call.1} parent=31 // pred_check_branch
          %211 = sbr.rel (%p209) target = $region36
        $region35: #{tpu_custom_call.1} parent=31 // pred_region
          %213 = dma.done %s205, 832
        $region36: #{tpu_custom_call.1} parent=31 // pred_fallthru
          _
        // Predicated region
        $region37: #{tpu_custom_call.1} parent=31 // pred_check
          %p214 = pneg %p80
        $region38: #{tpu_custom_call.1} parent=31 // pred_check_branch
          %216 = sbr.rel (%p214) target = $region40
        $region39: #{tpu_custom_call.1} parent=31 // pred_region
          %218 = dma.done [#allocation6], 1024
        $region40: #{tpu_custom_call.1} parent=31 // pred_fallthru
          _
        %s219 = sand.u32 %s41, 1
        %s220 = scalar_lea.sflag [#allocation3], %s219
        %s221 = sand.u32 %s41, 1
        %s222 = smul.addr %s221, 52
        %s223 = scalar_lea.vmem [#allocation2], %s222
        %p224 = pneg %p54
        %p225 = pneg %p51
        %p226 = pneg %p80
        %p227 = pneg %p77
        %p228 = scmp.lt.s32.totalorder %s26, 0
        %s229 = scalar_select %p228, %s26, 0
        %s230 = scalar_lea.vmem %s2, %s229
        %p231 = pneg %p106
        %p232 = pneg %p103
        %p233 = pneg %p134
        %p234 = pneg %p131
        %s235 = sand.u32 %s121, 1
        %s236 = scalar_lea.sflag [#allocation4], %s235
        %s237 = sand.u32 %s121, 1
        %s238 = smul.addr %s237, 52
        %s239 = scalar_lea.vmem [#allocation7], %s238
        %s240 = smul.u32 13, %s25
        %p241 = scmp.lt.s32.totalorder %s26, 0
        %s242 = scalar_select %p241, %s26, 0
        %s243 = scalar_lea.vmem %s2, %s242
        %s244 = smul.u32 13, %s25
        %v245 = vld [vmem:[%s208] sm:$0xf]
        %v246 = vld [vmem:[%s208 + $0x4] sm:$0xf]
        %v247 = vld [vmem:[%s208 + $0x8] sm:$0xf]
        %v248 = vld [vmem:[%s208 + $0xc] sm:$0xf]
        %v249 = vld [vmem:[%s208 + $0x10] sm:$0xf]
        %v250 = vld [vmem:[%s208 + $0x14] sm:$0xf]
        %v251 = vld [vmem:[%s208 + $0x18] sm:$0xf]
        %v252 = vld [vmem:[%s208 + $0x1c] sm:$0xf]
        %v253 = vld [vmem:[%s208 + $0x20] sm:$0xf]
        %v254 = vld [vmem:[%s208 + $0x24] sm:$0xf]
        %v255 = vld [vmem:[%s208 + $0x28] sm:$0xf]
        %v256 = vld [vmem:[%s208 + $0x2c] sm:$0xf]
        %v257 = vld [vmem:[%s208 + $0x30] sm:$0xf]
        %v258 = vld [vmem:[#allocation5] sm:$0xf]
        %v259 = vld [vmem:[#allocation5 + $0x4] sm:$0xf]
        %v260 = vld [vmem:[#allocation5 + $0x8] sm:$0xf]
        %v261 = vld [vmem:[#allocation5 + $0xc] sm:$0xf]
        %v262 = vld [vmem:[#allocation5 + $0x10] sm:$0xf]
        %v263 = vld [vmem:[#allocation5 + $0x14] sm:$0xf]
        %v264 = vld [vmem:[#allocation5 + $0x18] sm:$0xf]
        %v265 = vld [vmem:[#allocation5 + $0x1c] sm:$0xf]
        %v266 = vld [vmem:[#allocation5 + $0x20] sm:$0xf]
        %v267 = vld [vmem:[#allocation5 + $0x24] sm:$0xf]
        %v268 = vld [vmem:[#allocation5 + $0x28] sm:$0xf]
        %v269 = vld [vmem:[#allocation5 + $0x2c] sm:$0xf]
        %v270 = vld [vmem:[#allocation5 + $0x30] sm:$0xf]
        %v271 = vld [vmem:[#allocation5 + $0x34] sm:$0xf]
        %v272 = vld [vmem:[#allocation5 + $0x38] sm:$0xf]
        %v273 = vld [vmem:[#allocation5 + $0x3c] sm:$0xf]
        %v274 = vld [vmem:[%s243] sm:$0x1]
        %v276 = vperm.slane %v274, 0
        %v291 = vunpack.c.l.b16 %v245
        %v292 = vunpack.c.l.b16 %v246
        %v293 = vunpack.c.l.b16 %v247
        %v294 = vunpack.c.l.b16 %v248
        %v295 = vunpack.c.l.b16 %v249
        %v296 = vunpack.c.l.b16 %v250
        %v297 = vunpack.c.l.b16 %v251
        %v298 = vunpack.c.l.b16 %v252
        %v299 = vunpack.c.l.b16 %v253
        %v300 = vunpack.c.l.b16 %v254
        %v301 = vunpack.c.l.b16 %v255
        %v302 = vunpack.c.l.b16 %v256
        %v303 = vunpack.c.l.b16 %v257
        %v304 = vpack.c.b16 %v292, %v291
        %v305 = vpack.c.b16 %v294, %v293
        %v306 = vpack.c.b16 %v296, %v295
        %v307 = vpack.c.b16 %v298, %v297
        %v308 = vpack.c.b16 %v300, %v299
        %v309 = vpack.c.b16 %v302, %v301
        %v310 = vpack.c.b16 %v303, %v303
        %v334 = vunpack.c.l.b16 %v258
        %v335 = vunpack.c.l.b16 %v259
        %v336 = vunpack.c.l.b16 %v260
        %v337 = vunpack.c.l.b16 %v261
        %v338 = vunpack.c.l.b16 %v262
        %v339 = vunpack.c.l.b16 %v263
        %v340 = vunpack.c.l.b16 %v264
        %v341 = vunpack.c.l.b16 %v265
        %v342 = vunpack.c.l.b16 %v266
        %v343 = vunpack.c.l.b16 %v267
        %v344 = vunpack.c.l.b16 %v268
        %v345 = vunpack.c.l.b16 %v269
        %v346 = vunpack.c.l.b16 %v270
        %v347 = vunpack.c.l.b16 %v271
        %v348 = vunpack.c.l.b16 %v272
        %v349 = vunpack.c.l.b16 %v273
        %v350 = vpack.c.b16 %v335, %v334
        %v351 = vpack.c.b16 %v337, %v336
        %v352 = vpack.c.b16 %v339, %v338
        %v353 = vpack.c.b16 %v341, %v340
        %v354 = vpack.c.b16 %v343, %v342
        %v355 = vpack.c.b16 %v345, %v344
        %v356 = vpack.c.b16 %v347, %v346
        %v357 = vpack.c.b16 %v349, %v348
        %366 = vmatpush.bf16.msra.mxu0 %v357
        %367 = vmatpush.bf16.msra.mxu0 %v356
        %368 = vmatpush.bf16.msra.mxu0 %v355
        %369 = vmatpush.bf16.msra.mxu0 %v354
        %370 = vmatpush.bf16.msra.mxu0 %v353
        %371 = vmatpush.bf16.msra.mxu0 %v352
        %372 = vmatpush.bf16.msra.mxu0 %v351
        %373 = vmatpush.bf16.msra.mxu0 %v350
        %374 = vmatmul.bf16.gmra.mxu0 %v304
        %v375 = vpop.f32.mrf.mxu0
        %v376 = vadd.f32 %v276, %v375
        %v377 = vpop.f32.mrf.mxu0
        %v378 = vadd.f32 %v276, %v377
        %379 = vmatmul.bf16.gmra.mxu0 %v305
        %v380 = vpop.f32.mrf.mxu0
        %v381 = vadd.f32 %v276, %v380
        %v382 = vpop.f32.mrf.mxu0
        %v383 = vadd.f32 %v276, %v382
        %384 = vmatmul.bf16.gmra.mxu0 %v306
        %v385 = vpop.f32.mrf.mxu0
        %v386 = vadd.f32 %v276, %v385
        %v387 = vpop.f32.mrf.mxu0
        %v388 = vadd.f32 %v276, %v387
        %389 = vmatmul.bf16.gmra.mxu0 %v307
        %v390 = vpop.f32.mrf.mxu0
        %v391 = vadd.f32 %v276, %v390
        %v392 = vpop.f32.mrf.mxu0
        %v393 = vadd.f32 %v276, %v392
        %394 = vmatmul.bf16.gmra.mxu0 %v308
        %v395 = vpop.f32.mrf.mxu0
        %v396 = vadd.f32 %v276, %v395
        %v397 = vpop.f32.mrf.mxu0
        %v398 = vadd.f32 %v276, %v397
        %399 = vmatmul.bf16.gmra.mxu0 %v309
        %v400 = vpop.f32.mrf.mxu0
        %v401 = vadd.f32 %v276, %v400
        %v402 = vpop.f32.mrf.mxu0
        %v403 = vadd.f32 %v276, %v402
        %404 = vmatmul.bf16.gmra.mxu0 %v310
        %v405 = vpop.f32.mrf.mxu0
        %v406 = vadd.f32 %v276, %v405
        %v407 = vpop.f32.mrf.mxu0
        %408 = vdwg.mxu0
        %v409 = vmax.f32 %v376, 0.0
        %v410 = vmax.f32 %v378, 0.0
        %v411 = vmax.f32 %v381, 0.0
        %v412 = vmax.f32 %v383, 0.0
        %v413 = vmax.f32 %v386, 0.0
        %v414 = vmax.f32 %v388, 0.0
        %v415 = vmax.f32 %v391, 0.0
        %v416 = vmax.f32 %v393, 0.0
        %v417 = vmax.f32 %v396, 0.0
        %v418 = vmax.f32 %v398, 0.0
        %v419 = vmax.f32 %v401, 0.0
        %v420 = vmax.f32 %v403, 0.0
        %v421 = vmax.f32 %v406, 0.0
        %v422 = vpack.c.bf16 %v409, %v409
        %v423 = vpack.c.bf16 %v410, %v410
        %v424 = vpack.c.bf16 %v411, %v411
        %v425 = vpack.c.bf16 %v412, %v412
        %v426 = vpack.c.bf16 %v413, %v413
        %v427 = vpack.c.bf16 %v414, %v414
        %v428 = vpack.c.bf16 %v415, %v415
        %v429 = vpack.c.bf16 %v416, %v416
        %v430 = vpack.c.bf16 %v417, %v417
        %v431 = vpack.c.bf16 %v418, %v418
        %v432 = vpack.c.bf16 %v419, %v419
        %v433 = vpack.c.bf16 %v420, %v420
        %v434 = vpack.c.bf16 %v421, %v421
        %435 = vst [vmem:[%s239] sm:$0xf] %v422
        %436 = vst [vmem:[%s239 + $0x4] sm:$0xf] %v423
        %437 = vst [vmem:[%s239 + $0x8] sm:$0xf] %v424
        %438 = vst [vmem:[%s239 + $0xc] sm:$0xf] %v425
        %439 = vst [vmem:[%s239 + $0x10] sm:$0xf] %v426
        %440 = vst [vmem:[%s239 + $0x14] sm:$0xf] %v427
        %441 = vst [vmem:[%s239 + $0x18] sm:$0xf] %v428
        %442 = vst [vmem:[%s239 + $0x1c] sm:$0xf] %v429
        %443 = vst [vmem:[%s239 + $0x20] sm:$0xf] %v430
        %444 = vst [vmem:[%s239 + $0x24] sm:$0xf] %v431
        %445 = vst [vmem:[%s239 + $0x28] sm:$0xf] %v432
        %446 = vst [vmem:[%s239 + $0x2c] sm:$0xf] %v433
        %447 = vst [vmem:[%s239 + $0x30] sm:$0xf] %v434
        %s448 = sand.u32 %s121, 1
        %s449 = scalar_lea.sflag [#allocation4], %s448
        %s450 = sand.u32 %s121, 1
        %s451 = smul.addr %s450, 52
        %s452 = scalar_lea.vmem [#allocation7], %s451
        // Predicated region
        $region41: #{tpu_custom_call.1} parent=31 // pred_check
          %p453 = pneg %p131
        $region42: #{tpu_custom_call.1} parent=31 // pred_check_branch
          %455 = sbr.rel (%p453) target = $region44
        $region43: #{tpu_custom_call.1} parent=31 // pred_region
          %s456 = smul.u32 13, %s25
          %458 = vsyncadd %s449, 0
          %s459 = sadd.s32 %s26, %s456
          %s460 = smul.addr %s459, 4
          %s461 = scalar_lea.hbm %s3, %s460
          %s462 = sshll.u32 %s452, 4
          %s463 = int_to_ptr.vmem [resolvable:$true] %s462
          %s464 = sshll.u32 %s461, 4
          %s465 = int_to_ptr.hbm [resolvable:$true] %s464
          %470 = dma.vmem_to_hbm [thread:$0]  %s463, 832, %s465, %s449, 64, 64, 4
        $region44: #{tpu_custom_call.1} parent=31 // pred_fallthru
          _
      $region32: #{tpu_custom_call.1} parent=5 // pred_fallthru
        _
      %p471 = scmp.le.s32.totalorder 2, %s16
      // Predicated region
      $region45: #{tpu_custom_call.1} parent=5 // pred_check
        %p472 = pneg %p471
      $region46: #{tpu_custom_call.1} parent=5 // pred_check_branch
        %474 = sbr.rel (%p472) target = $region48
      $region47: #{tpu_custom_call.1} parent=5 // pred_region
        %s475 = ssub.s32 %s16, 2
        // Predicated region
        $region49: #{tpu_custom_call.1} parent=47 // pred_check
          %p476 = pneg %p137
        $region50: #{tpu_custom_call.1} parent=47 // pred_check_branch
          %478 = sbr.rel (%p476) target = $region52
        $region51: #{tpu_custom_call.1} parent=47 // pred_region
          %s479 = sand.u32 %s122, 1
          %s480 = scalar_lea.sflag [#allocation4], %s479
          %s481 = sand.u32 %s122, 1
          %s482 = smul.addr %s481, 52
          %s483 = scalar_lea.vmem [#allocation7], %s482
          %485 = dma.done %s480, 832
        $region52: #{tpu_custom_call.1} parent=47 // pred_fallthru
          _
      $region48: #{tpu_custom_call.1} parent=5 // pred_fallthru
        _
    $region6: #{tpu_custom_call.1} parent=1 // loop_footer
      %s20 = sadd.s32 1, %s16
    $region7: #{tpu_custom_call.1} parent=1 // loop_footer_branch
      %15 = sbr.rel target = $region3
    $region8: #{tpu_custom_call.1} parent=1 // loop_exit
      _
    %486 = vsyncpa [#allocation3], 1
    %s487 = scalar_lea.sflag [#allocation3], 1
    %488 = vsyncpa %s487, 1
    %489 = vsyncpa [#allocation6], 1
    %490 = vsyncpa [#allocation4], 1
    %s491 = scalar_lea.sflag [#allocation4], 1
    %492 = vsyncpa %s491, 1

</llo_original>
